<compile_context>
chip_gen: v6e
topology: v6e:2x2x1
jax: 0.10.0
libtpu: 0.0.40
codegen_flags: <defaults>
</compile_context>

<pallas_src>
import jax
import jax.numpy as jnp
from jax.experimental import pallas as pl
from jax.experimental.pallas import tpu as pltpu


def _r8(n):
    """Round up to a multiple of 8 (sublane tile)."""
    return -(-n // 8) * 8


def _param_rows(in_size, hidden):
    """8-aligned row offsets of each section inside the packed parameter slab."""
    r_wih = 0
    r_whh = r_wih + _r8(in_size)
    r_b = r_whh + _r8(hidden)
    r_wout = r_b + 8
    r_bout = r_wout + _r8(hidden)
    n_rows = r_bout + 8
    return r_wih, r_whh, r_b, r_wout, r_bout, n_rows


def lstm_kernel(x_ref, h0_ref, c0_ref, p_ref, y_ref, hN_ref, cN_ref):
    SB, In = x_ref.shape           # S*B_pad, In
    B, H = h0_ref.shape            # B_pad, H
    S = SB // B
    G = 4 * H                      # gate lane width
    Cp = y_ref.shape[-1]           # lane-padded n_classes (multiple of 128)

    r_wih, r_whh, r_b, r_wout, r_bout, _ = _param_rows(In, H)

    # One packed-parameter load; static views are free.
    P = p_ref[...]
    wih = P[r_wih:r_wih + In, :G]          # (In, 4H)
    whh = P[r_whh:r_whh + H, :G]           # (H,  4H)
    b = P[r_b:r_b + 1, :G]                 # (1,  4H)  = b_ih + b_hh
    wout = P[r_wout:r_wout + H, :Cp]       # (H,  Cp)
    bout = P[r_bout:r_bout + 1, :Cp]       # (1,  Cp)

    # (1) Hoisted, non-recurrent input projection: one MXU call for all steps.
    gx = (jnp.dot(x_ref[...], wih, preferred_element_type=jnp.float32)
          + b)                                              # (S*B, 4H)

    h = h0_ref[...].astype(jnp.float32)                     # (B, H)
    c = c0_ref[...].astype(jnp.float32)                     # (B, H)

    # (2) Fully unrolled recurrence (S is small & static); only h @ W_hh^T is
    #     on the serial dependency chain. Gate order follows PyTorch: [i,f,g,o].
    #     Each gx slice starts at an 8-aligned sublane offset (B == 8).
    hs = []
    for t in range(S):
        gates = gx[t * B:(t + 1) * B, :] + jnp.dot(
            h, whh, preferred_element_type=jnp.float32)     # (B, 4H)
        sig = jax.nn.sigmoid(gates)                         # full-tile EUP op
        tnh = jnp.tanh(gates)                               # full-tile EUP op
        i_g = sig[:, 0 * H:1 * H]
        f_g = sig[:, 1 * H:2 * H]
        g_g = tnh[:, 2 * H:3 * H]
        o_g = sig[:, 3 * H:4 * H]
        c = f_g * c + i_g * g_g
        h = o_g * jnp.tanh(c)
        hs.append(h)                                        # stays in vregs

    # (3) Final state written once.
    hN_ref[...] = h.astype(hN_ref.dtype)
    cN_ref[...] = c.astype(cN_ref.dtype)

    # (4) Batched, lane-dense output head: one matmul + one unmasked store.
    h_all = jnp.concatenate(hs, axis=0)                     # (S*B, H)
    y_ref[...] = (jnp.dot(h_all, wout, preferred_element_type=jnp.float32)
                  + bout).astype(y_ref.dtype)


def my_rnn_forward(x, state, params):
    """x: (S, B, In), state: (h0, c0) each (1, B, H). Returns (y, (hN, cN))."""
    h0, c0 = state
    S, B, In = x.shape
    H = h0.shape[-1]
    C = params["w_out"].shape[0]

    B_pad = _r8(B)                        # one full sublane tile per step
    C_pad = -(-C // 128) * 128            # lane-dense head output
    G = 4 * H
    LW = max(G, C_pad)                    # slab lane width

    r_wih, r_whh, r_b, r_wout, r_bout, n_rows = _param_rows(In, H)

    # Glue: pack all weights/biases into one zero-padded (n_rows, LW) slab,
    # pre-transposed so the kernel does plain (M,K)@(K,N) matmuls.
    slab = jnp.zeros((n_rows, LW), jnp.float32)
    slab = slab.at[r_wih:r_wih + In, :G].set(params["w_ih"].T)
    slab = slab.at[r_whh:r_whh + H, :G].set(params["w_hh"].T)
    slab = slab.at[r_b, :G].set(params["b_ih"] + params["b_hh"])
    slab = slab.at[r_wout:r_wout + H, :C].set(params["w_out"].T)
    slab = slab.at[r_bout, :C].set(params["b_out"])

    # Zero-pad batch to a full sublane tile (padded rows are sliced off below).
    if B_pad != B:
        xp = jnp.pad(x, ((0, 0), (0, B_pad - B), (0, 0)))
        h0p = jnp.pad(h0[0], ((0, B_pad - B), (0, 0)))
        c0p = jnp.pad(c0[0], ((0, B_pad - B), (0, 0)))
    else:
        xp, h0p, c0p = x, h0[0], c0[0]

    x2d = xp.reshape(S * B_pad, In)       # free row-major reshape

    full = lambda i: (0, 0)

    y2d, hN, cN = pl.pallas_call(
        lstm_kernel,
        out_shape=(
            jax.ShapeDtypeStruct((S * B_pad, C_pad), x.dtype),
            jax.ShapeDtypeStruct((B_pad, H), x.dtype),
            jax.ShapeDtypeStruct((B_pad, H), x.dtype),
        ),
        grid_spec=pltpu.PrefetchScalarGridSpec(
            num_scalar_prefetch=0,
            grid=(1,),                     # single invocation; recurrence unrolled in-kernel
            in_specs=[
                pl.BlockSpec((S * B_pad, In), full),   # x, flattened over time
                pl.BlockSpec((B_pad, H), full),        # h0
                pl.BlockSpec((B_pad, H), full),        # c0
                pl.BlockSpec((n_rows, LW), full),      # packed parameter slab
            ],
            out_specs=[
                pl.BlockSpec((S * B_pad, C_pad), full),  # y, lane-padded
                pl.BlockSpec((B_pad, H), full),          # h_N
                pl.BlockSpec((B_pad, H), full),          # c_N
            ],
        ),
        compiler_params=pltpu.CompilerParams(
            dimension_semantics=("arbitrary",),
        ),
    )(x2d, h0p, c0p, slab)

    y = y2d.reshape(S, B_pad, C_pad)[:, :B, :C]
    return y, (hN[:B][None], cN[:B][None])


def reference_forward(x, state, params):
    """Pure-JAX reference (lax.scan LSTM) for correctness check."""
    h0, c0 = state
    wih, whh = params["w_ih"], params["w_hh"]
    b = params["b_ih"] + params["b_hh"]
    wout, bout = params["w_out"], params["b_out"]
    H = h0.shape[-1]

    def step(carry, x_t):
        h, c = carry
        gates = x_t @ wih.T + h @ whh.T + b
        i = jax.nn.sigmoid(gates[:, 0 * H:1 * H])
        f = jax.nn.sigmoid(gates[:, 1 * H:2 * H])
        g = jnp.tanh(gates[:, 2 * H:3 * H])
        o = jax.nn.sigmoid(gates[:, 3 * H:4 * H])
        c = f * c + i * g
        h = o * jnp.tanh(c)
        return (h, c), h @ wout.T + bout

    (hN, cN), y = jax.lax.scan(step, (h0[0], c0[0]), x)
    return y, (hN[None], cN[None])


if __name__ == "__main__":
    # Small shapes consistent with MyRNN(n_classes=4, input_size=8, hidden_size=32)
    S, B, In, H, C = 8, 2, 8, 32, 4

    key = jax.random.PRNGKey(0)
    ks = jax.random.split(key, 8)
    scale = 1.0 / jnp.sqrt(H)

    params = {
        "w_ih": jax.random.uniform(ks[0], (4 * H, In), jnp.float32, -scale, scale),
        "w_hh": jax.random.uniform(ks[1], (4 * H, H), jnp.float32, -scale, scale),
        "b_ih": jax.random.uniform(ks[2], (4 * H,), jnp.float32, -scale, scale),
        "b_hh": jax.random.uniform(ks[3], (4 * H,), jnp.float32, -scale, scale),
        "w_out": jax.random.uniform(ks[4], (C, H), jnp.float32, -scale, scale),
        "b_out": jax.random.uniform(ks[5], (C,), jnp.float32, -scale, scale),
    }

    x = jax.random.normal(ks[6], (S, B, In), jnp.float32)
    h0 = jnp.zeros((1, B, H), jnp.float32)   # MyRNN.init_hidden -> zero state
    c0 = jnp.zeros((1, B, H), jnp.float32)

    y, (hN, cN) = my_rnn_forward(x, (h0, c0), params)
    jax.block_until_ready((y, hN, cN))

    y_ref, (hN_ref, cN_ref) = reference_forward(x, (h0, c0), params)
    assert jnp.allclose(y, y_ref, atol=1e-5), "output mismatch"
    assert jnp.allclose(hN, hN_ref, atol=1e-5), "h_n mismatch"
    assert jnp.allclose(cN, cN_ref, atol=1e-5), "c_n mismatch"

    print("KERNEL_OK")
</pallas_src>

<mosaic_0001>
module attributes {stable_mosaic.version = 11 : i64} {
  func.func @lstm_kernel(%arg0: i32, %arg1: memref<64x8xf32, #tpu.memory_space<vmem>>, %arg2: memref<8x32xf32, #tpu.memory_space<vmem>>, %arg3: memref<8x32xf32, #tpu.memory_space<vmem>>, %arg4: memref<88x128xf32, #tpu.memory_space<vmem>>, %arg5: memref<64x128xf32, #tpu.memory_space<vmem>>, %arg6: memref<8x32xf32, #tpu.memory_space<vmem>>, %arg7: memref<8x32xf32, #tpu.memory_space<vmem>>) attributes {dimension_semantics = [#tpu.dimension_semantics<arbitrary>], iteration_bounds = array<i64: 1>, scalar_prefetch = 0 : i64, scratch_operands = 0 : i64, tpu.core_type = #tpu.core_type<tc>, window_params = [{pipeline_mode = #tpu.pipeline_mode<synchronous>, transform_indices = @transform_0, window_bounds = array<i64: 64, 8>}, {pipeline_mode = #tpu.pipeline_mode<synchronous>, transform_indices = @transform_1, window_bounds = array<i64: 8, 32>}, {pipeline_mode = #tpu.pipeline_mode<synchronous>, transform_indices = @transform_2, window_bounds = array<i64: 8, 32>}, {pipeline_mode = #tpu.pipeline_mode<synchronous>, transform_indices = @transform_3, window_bounds = array<i64: 88, 128>}, {pipeline_mode = #tpu.pipeline_mode<synchronous>, transform_indices = @transform_4, window_bounds = array<i64: 64, 128>}, {pipeline_mode = #tpu.pipeline_mode<synchronous>, transform_indices = @transform_5, window_bounds = array<i64: 8, 32>}, {pipeline_mode = #tpu.pipeline_mode<synchronous>, transform_indices = @transform_6, window_bounds = array<i64: 8, 32>}]} {
    %c0 = arith.constant 0 : index
    %c0_0 = arith.constant 0 : index
    %0 = vector.load %arg4[%c0, %c0_0] : memref<88x128xf32, #tpu.memory_space<vmem>>, vector<88x128xf32>
    %1 = vector.extract_strided_slice %0 {offsets = [0, 0], sizes = [8, 128], strides = [1, 1]} : vector<88x128xf32> to vector<8x128xf32>
    %2 = vector.extract_strided_slice %0 {offsets = [8, 0], sizes = [32, 128], strides = [1, 1]} : vector<88x128xf32> to vector<32x128xf32>
    %3 = vector.extract_strided_slice %0 {offsets = [40, 0], sizes = [1, 128], strides = [1, 1]} : vector<88x128xf32> to vector<1x128xf32>
    %4 = vector.extract_strided_slice %0 {offsets = [48, 0], sizes = [32, 128], strides = [1, 1]} : vector<88x128xf32> to vector<32x128xf32>
    %5 = vector.extract_strided_slice %0 {offsets = [80, 0], sizes = [1, 128], strides = [1, 1]} : vector<88x128xf32> to vector<1x128xf32>
    %c0_1 = arith.constant 0 : index
    %c0_2 = arith.constant 0 : index
    %6 = vector.load %arg1[%c0_1, %c0_2] : memref<64x8xf32, #tpu.memory_space<vmem>>, vector<64x8xf32>
    %cst = arith.constant dense<0.000000e+00> : vector<64x128xf32>
    %7 = tpu.matmul %6, %1, %cst {dimension_numbers = #tpu.dot_dimension_numbers<[1], [0], [0], [1], [0, 0, 1, 1], [], []>} : vector<64x8xf32>, vector<8x128xf32>, vector<64x128xf32> -> vector<64x128xf32>
    %8 = vector.broadcast %3 : vector<1x128xf32> to vector<64x128xf32>
    %9 = arith.addf %7, %8 : vector<64x128xf32>
    %c0_3 = arith.constant 0 : index
    %c0_4 = arith.constant 0 : index
    %10 = vector.load %arg2[%c0_3, %c0_4] : memref<8x32xf32, #tpu.memory_space<vmem>>, vector<8x32xf32>
    %c0_5 = arith.constant 0 : index
    %c0_6 = arith.constant 0 : index
    %11 = vector.load %arg3[%c0_5, %c0_6] : memref<8x32xf32, #tpu.memory_space<vmem>>, vector<8x32xf32>
    %12 = vector.extract_strided_slice %9 {offsets = [0, 0], sizes = [8, 128], strides = [1, 1]} : vector<64x128xf32> to vector<8x128xf32>
    %cst_7 = arith.constant dense<0.000000e+00> : vector<8x128xf32>
    %13 = tpu.matmul %10, %2, %cst_7 {dimension_numbers = #tpu.dot_dimension_numbers<[1], [0], [0], [1], [0, 0, 1, 1], [], []>} : vector<8x32xf32>, vector<32x128xf32>, vector<8x128xf32> -> vector<8x128xf32>
    %14 = arith.addf %12, %13 : vector<8x128xf32>
    %15 = arith.negf %14 : vector<8x128xf32>
    %16 = math.exp %15 : vector<8x128xf32>
    %cst_8 = arith.constant 1.000000e+00 : f32
    %17 = vector.broadcast %cst_8 : f32 to vector<8x128xf32>
    %18 = arith.addf %17, %16 : vector<8x128xf32>
    %19 = arith.divf %17, %18 : vector<8x128xf32>
    %20 = math.tanh %14 : vector<8x128xf32>
    %21 = vector.extract_strided_slice %19 {offsets = [0, 0], sizes = [8, 32], strides = [1, 1]} : vector<8x128xf32> to vector<8x32xf32>
    %22 = vector.extract_strided_slice %19 {offsets = [0, 32], sizes = [8, 32], strides = [1, 1]} : vector<8x128xf32> to vector<8x32xf32>
    %23 = vector.extract_strided_slice %20 {offsets = [0, 64], sizes = [8, 32], strides = [1, 1]} : vector<8x128xf32> to vector<8x32xf32>
    %24 = vector.extract_strided_slice %19 {offsets = [0, 96], sizes = [8, 32], strides = [1, 1]} : vector<8x128xf32> to vector<8x32xf32>
    %25 = arith.mulf %22, %11 : vector<8x32xf32>
    %26 = arith.mulf %21, %23 : vector<8x32xf32>
    %27 = arith.addf %25, %26 : vector<8x32xf32>
    %28 = math.tanh %27 : vector<8x32xf32>
    %29 = arith.mulf %24, %28 : vector<8x32xf32>
    %30 = vector.extract_strided_slice %9 {offsets = [8, 0], sizes = [8, 128], strides = [1, 1]} : vector<64x128xf32> to vector<8x128xf32>
    %cst_9 = arith.constant dense<0.000000e+00> : vector<8x128xf32>
    %31 = tpu.matmul %29, %2, %cst_9 {dimension_numbers = #tpu.dot_dimension_numbers<[1], [0], [0], [1], [0, 0, 1, 1], [], []>} : vector<8x32xf32>, vector<32x128xf32>, vector<8x128xf32> -> vector<8x128xf32>
    %32 = arith.addf %30, %31 : vector<8x128xf32>
    %33 = arith.negf %32 : vector<8x128xf32>
    %34 = math.exp %33 : vector<8x128xf32>
    %cst_10 = arith.constant 1.000000e+00 : f32
    %35 = vector.broadcast %cst_10 : f32 to vector<8x128xf32>
    %36 = arith.addf %35, %34 : vector<8x128xf32>
    %37 = arith.divf %35, %36 : vector<8x128xf32>
    %38 = math.tanh %32 : vector<8x128xf32>
    %39 = vector.extract_strided_slice %37 {offsets = [0, 0], sizes = [8, 32], strides = [1, 1]} : vector<8x128xf32> to vector<8x32xf32>
    %40 = vector.extract_strided_slice %37 {offsets = [0, 32], sizes = [8, 32], strides = [1, 1]} : vector<8x128xf32> to vector<8x32xf32>
    %41 = vector.extract_strided_slice %38 {offsets = [0, 64], sizes = [8, 32], strides = [1, 1]} : vector<8x128xf32> to vector<8x32xf32>
    %42 = vector.extract_strided_slice %37 {offsets = [0, 96], sizes = [8, 32], strides = [1, 1]} : vector<8x128xf32> to vector<8x32xf32>
    %43 = arith.mulf %40, %27 : vector<8x32xf32>
    %44 = arith.mulf %39, %41 : vector<8x32xf32>
    %45 = arith.addf %43, %44 : vector<8x32xf32>
    %46 = math.tanh %45 : vector<8x32xf32>
    %47 = arith.mulf %42, %46 : vector<8x32xf32>
    %48 = vector.extract_strided_slice %9 {offsets = [16, 0], sizes = [8, 128], strides = [1, 1]} : vector<64x128xf32> to vector<8x128xf32>
    %cst_11 = arith.constant dense<0.000000e+00> : vector<8x128xf32>
    %49 = tpu.matmul %47, %2, %cst_11 {dimension_numbers = #tpu.dot_dimension_numbers<[1], [0], [0], [1], [0, 0, 1, 1], [], []>} : vector<8x32xf32>, vector<32x128xf32>, vector<8x128xf32> -> vector<8x128xf32>
    %50 = arith.addf %48, %49 : vector<8x128xf32>
    %51 = arith.negf %50 : vector<8x128xf32>
    %52 = math.exp %51 : vector<8x128xf32>
    %cst_12 = arith.constant 1.000000e+00 : f32
    %53 = vector.broadcast %cst_12 : f32 to vector<8x128xf32>
    %54 = arith.addf %53, %52 : vector<8x128xf32>
    %55 = arith.divf %53, %54 : vector<8x128xf32>
    %56 = math.tanh %50 : vector<8x128xf32>
    %57 = vector.extract_strided_slice %55 {offsets = [0, 0], sizes = [8, 32], strides = [1, 1]} : vector<8x128xf32> to vector<8x32xf32>
    %58 = vector.extract_strided_slice %55 {offsets = [0, 32], sizes = [8, 32], strides = [1, 1]} : vector<8x128xf32> to vector<8x32xf32>
    %59 = vector.extract_strided_slice %56 {offsets = [0, 64], sizes = [8, 32], strides = [1, 1]} : vector<8x128xf32> to vector<8x32xf32>
    %60 = vector.extract_strided_slice %55 {offsets = [0, 96], sizes = [8, 32], strides = [1, 1]} : vector<8x128xf32> to vector<8x32xf32>
    %61 = arith.mulf %58, %45 : vector<8x32xf32>
    %62 = arith.mulf %57, %59 : vector<8x32xf32>
    %63 = arith.addf %61, %62 : vector<8x32xf32>
    %64 = math.tanh %63 : vector<8x32xf32>
    %65 = arith.mulf %60, %64 : vector<8x32xf32>
    %66 = vector.extract_strided_slice %9 {offsets = [24, 0], sizes = [8, 128], strides = [1, 1]} : vector<64x128xf32> to vector<8x128xf32>
    %cst_13 = arith.constant dense<0.000000e+00> : vector<8x128xf32>
    %67 = tpu.matmul %65, %2, %cst_13 {dimension_numbers = #tpu.dot_dimension_numbers<[1], [0], [0], [1], [0, 0, 1, 1], [], []>} : vector<8x32xf32>, vector<32x128xf32>, vector<8x128xf32> -> vector<8x128xf32>
    %68 = arith.addf %66, %67 : vector<8x128xf32>
    %69 = arith.negf %68 : vector<8x128xf32>
    %70 = math.exp %69 : vector<8x128xf32>
    %cst_14 = arith.constant 1.000000e+00 : f32
    %71 = vector.broadcast %cst_14 : f32 to vector<8x128xf32>
    %72 = arith.addf %71, %70 : vector<8x128xf32>
    %73 = arith.divf %71, %72 : vector<8x128xf32>
    %74 = math.tanh %68 : vector<8x128xf32>
    %75 = vector.extract_strided_slice %73 {offsets = [0, 0], sizes = [8, 32], strides = [1, 1]} : vector<8x128xf32> to vector<8x32xf32>
    %76 = vector.extract_strided_slice %73 {offsets = [0, 32], sizes = [8, 32], strides = [1, 1]} : vector<8x128xf32> to vector<8x32xf32>
    %77 = vector.extract_strided_slice %74 {offsets = [0, 64], sizes = [8, 32], strides = [1, 1]} : vector<8x128xf32> to vector<8x32xf32>
    %78 = vector.extract_strided_slice %73 {offsets = [0, 96], sizes = [8, 32], strides = [1, 1]} : vector<8x128xf32> to vector<8x32xf32>
    %79 = arith.mulf %76, %63 : vector<8x32xf32>
    %80 = arith.mulf %75, %77 : vector<8x32xf32>
    %81 = arith.addf %79, %80 : vector<8x32xf32>
    %82 = math.tanh %81 : vector<8x32xf32>
    %83 = arith.mulf %78, %82 : vector<8x32xf32>
    %84 = vector.extract_strided_slice %9 {offsets = [32, 0], sizes = [8, 128], strides = [1, 1]} : vector<64x128xf32> to vector<8x128xf32>
    %cst_15 = arith.constant dense<0.000000e+00> : vector<8x128xf32>
    %85 = tpu.matmul %83, %2, %cst_15 {dimension_numbers = #tpu.dot_dimension_numbers<[1], [0], [0], [1], [0, 0, 1, 1], [], []>} : vector<8x32xf32>, vector<32x128xf32>, vector<8x128xf32> -> vector<8x128xf32>
    %86 = arith.addf %84, %85 : vector<8x128xf32>
    %87 = arith.negf %86 : vector<8x128xf32>
    %88 = math.exp %87 : vector<8x128xf32>
    %cst_16 = arith.constant 1.000000e+00 : f32
    %89 = vector.broadcast %cst_16 : f32 to vector<8x128xf32>
    %90 = arith.addf %89, %88 : vector<8x128xf32>
    %91 = arith.divf %89, %90 : vector<8x128xf32>
    %92 = math.tanh %86 : vector<8x128xf32>
    %93 = vector.extract_strided_slice %91 {offsets = [0, 0], sizes = [8, 32], strides = [1, 1]} : vector<8x128xf32> to vector<8x32xf32>
    %94 = vector.extract_strided_slice %91 {offsets = [0, 32], sizes = [8, 32], strides = [1, 1]} : vector<8x128xf32> to vector<8x32xf32>
    %95 = vector.extract_strided_slice %92 {offsets = [0, 64], sizes = [8, 32], strides = [1, 1]} : vector<8x128xf32> to vector<8x32xf32>
    %96 = vector.extract_strided_slice %91 {offsets = [0, 96], sizes = [8, 32], strides = [1, 1]} : vector<8x128xf32> to vector<8x32xf32>
    %97 = arith.mulf %94, %81 : vector<8x32xf32>
    %98 = arith.mulf %93, %95 : vector<8x32xf32>
    %99 = arith.addf %97, %98 : vector<8x32xf32>
    %100 = math.tanh %99 : vector<8x32xf32>
    %101 = arith.mulf %96, %100 : vector<8x32xf32>
    %102 = vector.extract_strided_slice %9 {offsets = [40, 0], sizes = [8, 128], strides = [1, 1]} : vector<64x128xf32> to vector<8x128xf32>
    %cst_17 = arith.constant dense<0.000000e+00> : vector<8x128xf32>
    %103 = tpu.matmul %101, %2, %cst_17 {dimension_numbers = #tpu.dot_dimension_numbers<[1], [0], [0], [1], [0, 0, 1, 1], [], []>} : vector<8x32xf32>, vector<32x128xf32>, vector<8x128xf32> -> vector<8x128xf32>
    %104 = arith.addf %102, %103 : vector<8x128xf32>
    %105 = arith.negf %104 : vector<8x128xf32>
    %106 = math.exp %105 : vector<8x128xf32>
    %cst_18 = arith.constant 1.000000e+00 : f32
    %107 = vector.broadcast %cst_18 : f32 to vector<8x128xf32>
    %108 = arith.addf %107, %106 : vector<8x128xf32>
    %109 = arith.divf %107, %108 : vector<8x128xf32>
    %110 = math.tanh %104 : vector<8x128xf32>
    %111 = vector.extract_strided_slice %109 {offsets = [0, 0], sizes = [8, 32], strides = [1, 1]} : vector<8x128xf32> to vector<8x32xf32>
    %112 = vector.extract_strided_slice %109 {offsets = [0, 32], sizes = [8, 32], strides = [1, 1]} : vector<8x128xf32> to vector<8x32xf32>
    %113 = vector.extract_strided_slice %110 {offsets = [0, 64], sizes = [8, 32], strides = [1, 1]} : vector<8x128xf32> to vector<8x32xf32>
    %114 = vector.extract_strided_slice %109 {offsets = [0, 96], sizes = [8, 32], strides = [1, 1]} : vector<8x128xf32> to vector<8x32xf32>
    %115 = arith.mulf %112, %99 : vector<8x32xf32>
    %116 = arith.mulf %111, %113 : vector<8x32xf32>
    %117 = arith.addf %115, %116 : vector<8x32xf32>
    %118 = math.tanh %117 : vector<8x32xf32>
    %119 = arith.mulf %114, %118 : vector<8x32xf32>
    %120 = vector.extract_strided_slice %9 {offsets = [48, 0], sizes = [8, 128], strides = [1, 1]} : vector<64x128xf32> to vector<8x128xf32>
    %cst_19 = arith.constant dense<0.000000e+00> : vector<8x128xf32>
    %121 = tpu.matmul %119, %2, %cst_19 {dimension_numbers = #tpu.dot_dimension_numbers<[1], [0], [0], [1], [0, 0, 1, 1], [], []>} : vector<8x32xf32>, vector<32x128xf32>, vector<8x128xf32> -> vector<8x128xf32>
    %122 = arith.addf %120, %121 : vector<8x128xf32>
    %123 = arith.negf %122 : vector<8x128xf32>
    %124 = math.exp %123 : vector<8x128xf32>
    %cst_20 = arith.constant 1.000000e+00 : f32
    %125 = vector.broadcast %cst_20 : f32 to vector<8x128xf32>
    %126 = arith.addf %125, %124 : vector<8x128xf32>
    %127 = arith.divf %125, %126 : vector<8x128xf32>
    %128 = math.tanh %122 : vector<8x128xf32>
    %129 = vector.extract_strided_slice %127 {offsets = [0, 0], sizes = [8, 32], strides = [1, 1]} : vector<8x128xf32> to vector<8x32xf32>
    %130 = vector.extract_strided_slice %127 {offsets = [0, 32], sizes = [8, 32], strides = [1, 1]} : vector<8x128xf32> to vector<8x32xf32>
    %131 = vector.extract_strided_slice %128 {offsets = [0, 64], sizes = [8, 32], strides = [1, 1]} : vector<8x128xf32> to vector<8x32xf32>
    %132 = vector.extract_strided_slice %127 {offsets = [0, 96], sizes = [8, 32], strides = [1, 1]} : vector<8x128xf32> to vector<8x32xf32>
    %133 = arith.mulf %130, %117 : vector<8x32xf32>
    %134 = arith.mulf %129, %131 : vector<8x32xf32>
    %135 = arith.addf %133, %134 : vector<8x32xf32>
    %136 = math.tanh %135 : vector<8x32xf32>
    %137 = arith.mulf %132, %136 : vector<8x32xf32>
    %138 = vector.extract_strided_slice %9 {offsets = [56, 0], sizes = [8, 128], strides = [1, 1]} : vector<64x128xf32> to vector<8x128xf32>
    %cst_21 = arith.constant dense<0.000000e+00> : vector<8x128xf32>
    %139 = tpu.matmul %137, %2, %cst_21 {dimension_numbers = #tpu.dot_dimension_numbers<[1], [0], [0], [1], [0, 0, 1, 1], [], []>} : vector<8x32xf32>, vector<32x128xf32>, vector<8x128xf32> -> vector<8x128xf32>
    %140 = arith.addf %138, %139 : vector<8x128xf32>
    %141 = arith.negf %140 : vector<8x128xf32>
    %142 = math.exp %141 : vector<8x128xf32>
    %cst_22 = arith.constant 1.000000e+00 : f32
    %143 = vector.broadcast %cst_22 : f32 to vector<8x128xf32>
    %144 = arith.addf %143, %142 : vector<8x128xf32>
    %145 = arith.divf %143, %144 : vector<8x128xf32>
    %146 = math.tanh %140 : vector<8x128xf32>
    %147 = vector.extract_strided_slice %145 {offsets = [0, 0], sizes = [8, 32], strides = [1, 1]} : vector<8x128xf32> to vector<8x32xf32>
    %148 = vector.extract_strided_slice %145 {offsets = [0, 32], sizes = [8, 32], strides = [1, 1]} : vector<8x128xf32> to vector<8x32xf32>
    %149 = vector.extract_strided_slice %146 {offsets = [0, 64], sizes = [8, 32], strides = [1, 1]} : vector<8x128xf32> to vector<8x32xf32>
    %150 = vector.extract_strided_slice %145 {offsets = [0, 96], sizes = [8, 32], strides = [1, 1]} : vector<8x128xf32> to vector<8x32xf32>
    %151 = arith.mulf %148, %135 : vector<8x32xf32>
    %152 = arith.mulf %147, %149 : vector<8x32xf32>
    %153 = arith.addf %151, %152 : vector<8x32xf32>
    %154 = math.tanh %153 : vector<8x32xf32>
    %155 = arith.mulf %150, %154 : vector<8x32xf32>
    %c0_23 = arith.constant 0 : index
    %c0_24 = arith.constant 0 : index
    %156 = vector.load %arg6[%c0_23, %c0_24] : memref<8x32xf32, #tpu.memory_space<vmem>>, vector<8x32xf32>
    tpu.vector_store %arg6[%c0_23, %c0_24], %155 {strides = array<i32>} : memref<8x32xf32, #tpu.memory_space<vmem>>, vector<8x32xf32>,
    %c0_25 = arith.constant 0 : index
    %c0_26 = arith.constant 0 : index
    %157 = vector.load %arg7[%c0_25, %c0_26] : memref<8x32xf32, #tpu.memory_space<vmem>>, vector<8x32xf32>
    tpu.vector_store %arg7[%c0_25, %c0_26], %153 {strides = array<i32>} : memref<8x32xf32, #tpu.memory_space<vmem>>, vector<8x32xf32>,
    %158 = tpu.concatenate %29, %47, %65, %83, %101, %119, %137, %155 in 0 : vector<8x32xf32>, vector<8x32xf32>, vector<8x32xf32>, vector<8x32xf32>, vector<8x32xf32>, vector<8x32xf32>, vector<8x32xf32>, vector<8x32xf32> -> vector<64x32xf32>
    %cst_27 = arith.constant dense<0.000000e+00> : vector<64x128xf32>
    %159 = tpu.matmul %158, %4, %cst_27 {dimension_numbers = #tpu.dot_dimension_numbers<[1], [0], [0], [1], [0, 0, 1, 1], [], []>} : vector<64x32xf32>, vector<32x128xf32>, vector<64x128xf32> -> vector<64x128xf32>
    %160 = vector.broadcast %5 : vector<1x128xf32> to vector<64x128xf32>
    %161 = arith.addf %159, %160 : vector<64x128xf32>
    %c0_28 = arith.constant 0 : index
    %c0_29 = arith.constant 0 : index
    %162 = vector.load %arg5[%c0_28, %c0_29] : memref<64x128xf32, #tpu.memory_space<vmem>>, vector<64x128xf32>
    tpu.vector_store %arg5[%c0_28, %c0_29], %161 {strides = array<i32>} : memref<64x128xf32, #tpu.memory_space<vmem>>, vector<64x128xf32>,
    return
  }
  func.func @transform_0(%arg0: i32) -> (i32, i32) {
    %c0_i32 = arith.constant 0 : i32
    %c0_i32_0 = arith.constant 0 : i32
    %c0_i32_1 = arith.constant 0 : i32
    return %c0_i32, %c0_i32_0 : i32, i32
  }
  func.func @transform_1(%arg0: i32) -> (i32, i32) {
    %c0_i32 = arith.constant 0 : i32
    %c0_i32_0 = arith.constant 0 : i32
    %c0_i32_1 = arith.constant 0 : i32
    return %c0_i32, %c0_i32_0 : i32, i32
  }
  func.func @transform_2(%arg0: i32) -> (i32, i32) {
    %c0_i32 = arith.constant 0 : i32
    %c0_i32_0 = arith.constant 0 : i32
    %c0_i32_1 = arith.constant 0 : i32
    return %c0_i32, %c0_i32_0 : i32, i32
  }
  func.func @transform_3(%arg0: i32) -> (i32, i32) {
    %c0_i32 = arith.constant 0 : i32
    %c0_i32_0 = arith.constant 0 : i32
    %c0_i32_1 = arith.constant 0 : i32
    return %c0_i32, %c0_i32_0 : i32, i32
  }
  func.func @transform_4(%arg0: i32) -> (i32, i32) {
    %c0_i32 = arith.constant 0 : i32
    %c0_i32_0 = arith.constant 0 : i32
    %c0_i32_1 = arith.constant 0 : i32
    return %c0_i32, %c0_i32_0 : i32, i32
  }
  func.func @transform_5(%arg0: i32) -> (i32, i32) {
    %c0_i32 = arith.constant 0 : i32
    %c0_i32_0 = arith.constant 0 : i32
    %c0_i32_1 = arith.constant 0 : i32
    return %c0_i32, %c0_i32_0 : i32, i32
  }
  func.func @transform_6(%arg0: i32) -> (i32, i32) {
    %c0_i32 = arith.constant 0 : i32
    %c0_i32_0 = arith.constant 0 : i32
    %c0_i32_1 = arith.constant 0 : i32
    return %c0_i32, %c0_i32_0 : i32, i32
  }
}

</mosaic_0001>

<llo_original>
// kernel: tpu_custom_call.1
$region0: #{tpu_custom_call.1}
  #allocation0 [shape = 'u32[]', space=smem, size = 0x4, offset = 0x4, fixed_abs, tag = 'smem constant byte address 0x4 - core index']
  #allocation1 [shape = 'u32[144,128]{1,0:T(1,128)}', space=vmem, size = 0x12000, scoped, tag = 'internal scratch']
  %s0 = inlined_call_operand.vmem [shape: f32[64,8], index: 0, kind: input, shape index: {}]
  %s1 = inlined_call_operand.vmem [shape: f32[8,32], index: 1, kind: input, shape index: {}]
  %s2 = inlined_call_operand.vmem [shape: f32[8,32], index: 2, kind: input, shape index: {}]
  %s3 = inlined_call_operand.hbm [shape: f32[88,128], index: 3, kind: input, shape index: {}]
  %s4 = inlined_call_operand.hbm [shape: f32[64,128], index: 4, kind: output, shape index: {0}]
  %s5 = inlined_call_operand.hbm [shape: f32[8,32], index: 5, kind: output, shape index: {1}]
  %s6 = inlined_call_operand.hbm [shape: f32[8,32], index: 6, kind: output, shape index: {2}]
  %7 = xla_tuple %s4, %s5, %s6
  %s8 = sld [smem:[#allocation0]]
  $region46: #{tpu_custom_call.1} parent=0
    _
  %s10 = ssub.s32 1, %s8
  %s11 = scalar_select 0, %s10, %s8
  $region1: #{tpu_custom_call.1} parent=0
    #allocation2 [shape = 'u8[45056]{0}', space=vmem, size = 0xb000, scoped, tag = 'input window, operand 3, single buffered']
    #allocation3 [shape = 's32[1]{0}', space=sflag, size = 0x4, scoped, tag = 'scoped memory for tpu_custom_call.1']
    #allocation4 [shape = 's32[1]{0}', space=sflag, size = 0x4, scoped, tag = 'scoped memory for tpu_custom_call.1']
    #allocation5 [shape = 'u8[32768]{0}', space=vmem, size = 0x8000, scoped, tag = 'output window, operand 0, single buffered']
    #allocation6 [shape = 'u8[4096]{0}', space=vmem, size = 0x1000, scoped, tag = 'output window, operand 1, single buffered']
    #allocation7 [shape = 's32[1]{0}', space=sflag, size = 0x4, scoped, tag = 'scoped memory for tpu_custom_call.1']
    #allocation8 [shape = 'u8[4096]{0}', space=vmem, size = 0x1000, scoped, tag = 'output window, operand 2, single buffered']
    %12 = vsyncpa [#allocation3], 0
    %13 = vsyncpa [#allocation4], 0
    %14 = vsyncpa [#allocation7], 0
    // Predicated region
    $region2: #{tpu_custom_call.1} parent=1 // pred_check
      _
    $region3: #{tpu_custom_call.1} parent=1 // pred_check_branch
      %16 = sbr.rel (0) target = $region5
    $region4: #{tpu_custom_call.1} parent=1 // pred_region
      _
    $region5: #{tpu_custom_call.1} parent=1 // pred_fallthru
      _
    // Predicated region
    $region6: #{tpu_custom_call.1} parent=1 // pred_check
      _
    $region7: #{tpu_custom_call.1} parent=1 // pred_check_branch
      %18 = sbr.rel (0) target = $region9
    $region8: #{tpu_custom_call.1} parent=1 // pred_region
      _
    $region9: #{tpu_custom_call.1} parent=1 // pred_fallthru
      _
    // Predicated region
    $region10: #{tpu_custom_call.1} parent=1 // pred_check
      _
    $region11: #{tpu_custom_call.1} parent=1 // pred_check_branch
      %20 = sbr.rel (0) target = $region13
    $region12: #{tpu_custom_call.1} parent=1 // pred_region
      _
    $region13: #{tpu_custom_call.1} parent=1 // pred_fallthru
      _
    // Predicated region
    $region14: #{tpu_custom_call.1} parent=1 // pred_check
      _
    $region15: #{tpu_custom_call.1} parent=1 // pred_check_branch
      %22 = sbr.rel (0) target = $region17
    $region16: #{tpu_custom_call.1} parent=1 // pred_region
      %s24 = ssub.s32 1408, 1408
      %25 = vsyncadd [#allocation3], %s24
      %s26 = sshll.u32 [#allocation2], 4
      %s27 = int_to_ptr.vmem [resolvable:$true] %s26
      %32 = dma.hbm_to_vmem [thread:$0]  %s3, 1408, %s27, [#allocation3], 128, 128, 8
    $region17: #{tpu_custom_call.1} parent=1 // pred_fallthru
      _
    // Predicated region
    $region18: #{tpu_custom_call.1} parent=1 // pred_check
      _
    $region19: #{tpu_custom_call.1} parent=1 // pred_check_branch
      %34 = sbr.rel (0) target = $region21
    $region20: #{tpu_custom_call.1} parent=1 // pred_region
      %35 = dma.done [#allocation3], 1408
    $region21: #{tpu_custom_call.1} parent=1 // pred_fallthru
      _
    %v36 = vld [vmem:[#allocation2] sm:$0xff]
    %v37 = vld [vmem:[#allocation2 + $0x8] sm:$0xff]
    %v38 = vld [vmem:[#allocation2 + $0x10] sm:$0xff]
    %v39 = vld [vmem:[#allocation2 + $0x18] sm:$0xff]
    %v40 = vld [vmem:[#allocation2 + $0x20] sm:$0xff]
    %v41 = vld [vmem:[#allocation2 + $0x28] sm:$0xff]
    %v42 = vld [vmem:[#allocation2 + $0x30] sm:$0xff]
    %v43 = vld [vmem:[#allocation2 + $0x38] sm:$0xff]
    %v44 = vld [vmem:[#allocation2 + $0x40] sm:$0xff]
    %v45 = vld [vmem:[#allocation2 + $0x48] sm:$0xff]
    %v46 = vld [vmem:[#allocation2 + $0x50] sm:$0xff]
    %v47 = vld [vmem:[%s0] sm:$0xff]
    %v48 = vld [vmem:[%s0 + $0x8] sm:$0xff]
    %v49 = vld [vmem:[%s0 + $0x10] sm:$0xff]
    %v50 = vld [vmem:[%s0 + $0x18] sm:$0xff]
    %v51 = vld [vmem:[%s0 + $0x20] sm:$0xff]
    %v52 = vld [vmem:[%s0 + $0x28] sm:$0xff]
    %v53 = vld [vmem:[%s0 + $0x30] sm:$0xff]
    %v54 = vld [vmem:[%s0 + $0x38] sm:$0xff]
    %v55 = vlaneseq
    %v56 = vshrl.u32 %v55, 7
    %v57 = vsub.s32 0, %v56
    %v58 = vrot.slane %v41, %v57
    %vm59 = vcmask 64512
    %v61 = vsel %vm59, %v47, 0
    %v64 = vsel %vm59, %v48, 0
    %v67 = vsel %vm59, %v49, 0
    %v70 = vsel %vm59, %v50, 0
    %v73 = vsel %vm59, %v51, 0
    %v76 = vsel %vm59, %v52, 0
    %v79 = vsel %vm59, %v53, 0
    %v82 = vsel %vm59, %v54, 0
    %84 = vmatprep.subr.mxu0 0.0
    %85 = vmatpush1.msra.mxu0 0.0
    %86 = vmatprep.subr.mxu0 0.0
    %87 = vmatpush1.msra.mxu0 0.0
    %88 = vmatprep.subr.mxu0 0.0
    %89 = vmatpush1.msra.mxu0 0.0
    %90 = vmatprep.subr.mxu0 0.0
    %91 = vmatpush1.msra.mxu0 0.0
    %92 = vmatprep.subr.mxu0 0.0
    %93 = vmatpush1.msra.mxu0 0.0
    %94 = vmatprep.subr.mxu0 0.0
    %95 = vmatpush1.msra.mxu0 0.0
    %96 = vmatprep.subr.mxu0 0.0
    %97 = vmatpush1.msra.mxu0 0.0
    %98 = vmatprep.subr.mxu0 0.0
    %99 = vmatpush1.msra.mxu0 0.0
    %100 = vmatprep.subr.mxu0 0.0
    %101 = vmatpush1.msra.mxu0 0.0
    %102 = vmatprep.subr.mxu0 0.0
    %103 = vmatpush1.msra.mxu0 0.0
    %104 = vmatprep.subr.mxu0 0.0
    %105 = vmatpush1.msra.mxu0 0.0
    %106 = vmatprep.subr.mxu0 0.0
    %107 = vmatpush1.msra.mxu0 0.0
    %108 = vmatprep.subr.mxu0 0.0
    %109 = vmatpush1.msra.mxu0 0.0
    %110 = vmatprep.subr.mxu0 0.0
    %111 = vmatpush1.msra.mxu0 0.0
    %112 = vmatprep.subr.mxu0 0.0
    %113 = vmatpush1.msra.mxu0 0.0
    %114 = vmatprep.subr.mxu0 0.0
    %115 = vmatpush1.msra.mxu0 %v36
    %116 = vmatprep.subr.mxu0 0.0
    %117 = vmatpush2.msra.mxu0 0.0
    %118 = vmatprep.subr.mxu0 0.0
    %119 = vmatpush2.msra.mxu0 0.0
    %120 = vmatprep.subr.mxu0 0.0
    %121 = vmatpush2.msra.mxu0 0.0
    %122 = vmatprep.subr.mxu0 0.0
    %123 = vmatpush2.msra.mxu0 0.0
    %124 = vmatprep.subr.mxu0 0.0
    %125 = vmatpush2.msra.mxu0 0.0
    %126 = vmatprep.subr.mxu0 0.0
    %127 = vmatpush2.msra.mxu0 0.0
    %128 = vmatprep.subr.mxu0 0.0
    %129 = vmatpush2.msra.mxu0 0.0
    %130 = vmatprep.subr.mxu0 0.0
    %131 = vmatpush2.msra.mxu0 0.0
    %132 = vmatprep.subr.mxu0 0.0
    %133 = vmatpush2.msra.mxu0 0.0
    %134 = vmatprep.subr.mxu0 0.0
    %135 = vmatpush2.msra.mxu0 0.0
    %136 = vmatprep.subr.mxu0 0.0
    %137 = vmatpush2.msra.mxu0 0.0
    %138 = vmatprep.subr.mxu0 0.0
    %139 = vmatpush2.msra.mxu0 0.0
    %140 = vmatprep.subr.mxu0 0.0
    %141 = vmatpush2.msra.mxu0 0.0
    %142 = vmatprep.subr.mxu0 0.0
    %143 = vmatpush2.msra.mxu0 0.0
    %144 = vmatprep.subr.mxu0 0.0
    %145 = vmatpush2.msra.mxu0 0.0
    %146 = vmatprep.subr.mxu0 0.0
    %147 = vmatpush2.msra.mxu0 0.0
    %148 = vmatprep.mubr.f32.mxu0 0.0
    %149 = vmatmul.mubr.f32.gmra.mxu0 %v61
    %v150 = vpop.f32.mrf.mxu0
    %v151 = vadd.f32 %v58, %v150
    %v152 = vpop.f32.mrf.mxu0
    %153 = vmatprep.mubr.f32.mxu0 0.0
    %154 = vmatmul.mubr.f32.gmra.mxu0 %v64
    %v155 = vpop.f32.mrf.mxu0
    %v156 = vadd.f32 %v58, %v155
    %v157 = vpop.f32.mrf.mxu0
    %158 = vmatprep.mubr.f32.mxu0 0.0
    %159 = vmatmul.mubr.f32.gmra.mxu0 %v67
    %v160 = vpop.f32.mrf.mxu0
    %v161 = vadd.f32 %v58, %v160
    %v162 = vpop.f32.mrf.mxu0
    %163 = vmatprep.mubr.f32.mxu0 0.0
    %164 = vmatmul.mubr.f32.gmra.mxu0 %v70
    %v165 = vpop.f32.mrf.mxu0
    %v166 = vadd.f32 %v58, %v165
    %v167 = vpop.f32.mrf.mxu0
    %168 = vmatprep.mubr.f32.mxu0 0.0
    %169 = vmatmul.mubr.f32.gmra.mxu0 %v73
    %v170 = vpop.f32.mrf.mxu0
    %v171 = vadd.f32 %v58, %v170
    %v172 = vpop.f32.mrf.mxu0
    %173 = vmatprep.mubr.f32.mxu0 0.0
    %174 = vmatmul.mubr.f32.gmra.mxu0 %v76
    %v175 = vpop.f32.mrf.mxu0
    %v176 = vadd.f32 %v58, %v175
    %v177 = vpop.f32.mrf.mxu0
    %178 = vmatprep.mubr.f32.mxu0 0.0
    %179 = vmatmul.mubr.f32.gmra.mxu0 %v79
    %v180 = vpop.f32.mrf.mxu0
    %v181 = vadd.f32 %v58, %v180
    %v182 = vpop.f32.mrf.mxu0
    %183 = vmatprep.mubr.f32.mxu0 0.0
    %184 = vmatmul.mubr.f32.gmra.mxu0 %v82
    %v185 = vpop.f32.mrf.mxu0
    %v186 = vadd.f32 %v58, %v185
    %v187 = vpop.f32.mrf.mxu0
    %188 = vdwg.mxu0
    %v189 = vld [vmem:[%s1] sm:$0xff]
    %v190 = vld [vmem:[%s2] sm:$0xff]
    %vm191 = vcmask 261120
    %v193 = vsel %vm191, %v189, 0
    %195 = vmatprep.subr.mxu0 0.0
    %196 = vmatpush1.msra.mxu0 0.0
    %197 = vmatprep.subr.mxu0 0.0
    %198 = vmatpush1.msra.mxu0 0.0
    %199 = vmatprep.subr.mxu0 0.0
    %200 = vmatpush1.msra.mxu0 0.0
    %201 = vmatprep.subr.mxu0 0.0
    %202 = vmatpush1.msra.mxu0 0.0
    %203 = vmatprep.subr.mxu0 0.0
    %204 = vmatpush1.msra.mxu0 0.0
    %205 = vmatprep.subr.mxu0 0.0
    %206 = vmatpush1.msra.mxu0 0.0
    %207 = vmatprep.subr.mxu0 0.0
    %208 = vmatpush1.msra.mxu0 0.0
    %209 = vmatprep.subr.mxu0 0.0
    %210 = vmatpush1.msra.mxu0 0.0
    %211 = vmatprep.subr.mxu0 0.0
    %212 = vmatpush1.msra.mxu0 0.0
    %213 = vmatprep.subr.mxu0 0.0
    %214 = vmatpush1.msra.mxu0 0.0
    %215 = vmatprep.subr.mxu0 0.0
    %216 = vmatpush1.msra.mxu0 0.0
    %217 = vmatprep.subr.mxu0 0.0
    %218 = vmatpush1.msra.mxu0 0.0
    %219 = vmatprep.subr.mxu0 0.0
    %220 = vmatpush1.msra.mxu0 %v40
    %221 = vmatprep.subr.mxu0 0.0
    %222 = vmatpush1.msra.mxu0 %v39
    %223 = vmatprep.subr.mxu0 0.0
    %224 = vmatpush1.msra.mxu0 %v38
    %225 = vmatprep.subr.mxu0 0.0
    %226 = vmatpush1.msra.mxu0 %v37
    %227 = vmatprep.subr.mxu0 0.0
    %228 = vmatpush2.msra.mxu0 0.0
    %229 = vmatprep.subr.mxu0 0.0
    %230 = vmatpush2.msra.mxu0 0.0
    %231 = vmatprep.subr.mxu0 0.0
    %232 = vmatpush2.msra.mxu0 0.0
    %233 = vmatprep.subr.mxu0 0.0
    %234 = vmatpush2.msra.mxu0 0.0
    %235 = vmatprep.subr.mxu0 0.0
    %236 = vmatpush2.msra.mxu0 0.0
    %237 = vmatprep.subr.mxu0 0.0
    %238 = vmatpush2.msra.mxu0 0.0
    %239 = vmatprep.subr.mxu0 0.0
    %240 = vmatpush2.msra.mxu0 0.0
    %241 = vmatprep.subr.mxu0 0.0
    %242 = vmatpush2.msra.mxu0 0.0
    %243 = vmatprep.subr.mxu0 0.0
    %244 = vmatpush2.msra.mxu0 0.0
    %245 = vmatprep.subr.mxu0 0.0
    %246 = vmatpush2.msra.mxu0 0.0
    %247 = vmatprep.subr.mxu0 0.0
    %248 = vmatpush2.msra.mxu0 0.0
    %249 = vmatprep.subr.mxu0 0.0
    %250 = vmatpush2.msra.mxu0 0.0
    %251 = vmatprep.subr.mxu0 0.0
    %252 = vmatpush2.msra.mxu0 0.0
    %253 = vmatprep.subr.mxu0 0.0
    %254 = vmatpush2.msra.mxu0 0.0
    %255 = vmatprep.subr.mxu0 0.0
    %256 = vmatpush2.msra.mxu0 0.0
    %257 = vmatprep.subr.mxu0 0.0
    %258 = vmatpush2.msra.mxu0 0.0
    %259 = vmatprep.mubr.f32.mxu0 0.0
    %260 = vmatmul.mubr.f32.gmra.mxu0 %v193
    %v261 = vpop.f32.mrf.mxu0
    %v262 = vadd.f32 0.0, %v261
    %v263 = vpop.f32.mrf.mxu0
    %264 = vdwg.mxu0
    %v265 = vadd.f32 %v151, %v262
    %v266 = vxor.u32 %v265, 2147483648
    %v267 = vmul.f32 %v266, 1.442695
    %v268 = vpow.pop %v267
    %v269 = vadd.f32 %v268, 1.0
    %v270 = vrcp.pop %v269
    %v271 = vmul.f32 1.0, %v270
    %v272 = vtanh.pop %v265
    %274 = vrot.lane.b32.xlu0 %v190, 32
    %v275 = vpop.permute.xlu0 %274
    %v277 = vmul.f32 %v271, %v275
    %279 = vrot.lane.b32.xlu0 %v272, 64
    %v280 = vpop.permute.xlu0 %279
    %v282 = vmul.f32 %v271, %v280
    %284 = vrot.lane.b32.xlu0 %v282, 32
    %v285 = vpop.permute.xlu0 %284
    %v287 = vadd.f32 %v277, %v285
    %v288 = vtanh.pop %v287
    %290 = vrot.lane.b32.xlu0 %v288, 64
    %v291 = vpop.permute.xlu0 %290
    %v293 = vmul.f32 %v271, %v291
    %295 = vrot.lane.b32.xlu0 %v293, 32
    %v296 = vpop.permute.xlu0 %295
    %v297 = vsel %vm191, %v296, 0
    %299 = vmatprep.subr.mxu0 0.0
    %300 = vmatpush1.msra.mxu0 0.0
    %301 = vmatprep.subr.mxu0 0.0
    %302 = vmatpush1.msra.mxu0 0.0
    %303 = vmatprep.subr.mxu0 0.0
    %304 = vmatpush1.msra.mxu0 0.0
    %305 = vmatprep.subr.mxu0 0.0
    %306 = vmatpush1.msra.mxu0 0.0
    %307 = vmatprep.subr.mxu0 0.0
    %308 = vmatpush1.msra.mxu0 0.0
    %309 = vmatprep.subr.mxu0 0.0
    %310 = vmatpush1.msra.mxu0 0.0
    %311 = vmatprep.subr.mxu0 0.0
    %312 = vmatpush1.msra.mxu0 0.0
    %313 = vmatprep.subr.mxu0 0.0
    %314 = vmatpush1.msra.mxu0 0.0
    %315 = vmatprep.subr.mxu0 0.0
    %316 = vmatpush1.msra.mxu0 0.0
    %317 = vmatprep.subr.mxu0 0.0
    %318 = vmatpush1.msra.mxu0 0.0
    %319 = vmatprep.subr.mxu0 0.0
    %320 = vmatpush1.msra.mxu0 0.0
    %321 = vmatprep.subr.mxu0 0.0
    %322 = vmatpush1.msra.mxu0 0.0
    %323 = vmatprep.subr.mxu0 0.0
    %324 = vmatpush1.msra.mxu0 %v40
    %325 = vmatprep.subr.mxu0 0.0
    %326 = vmatpush1.msra.mxu0 %v39
    %327 = vmatprep.subr.mxu0 0.0
    %328 = vmatpush1.msra.mxu0 %v38
    %329 = vmatprep.subr.mxu0 0.0
    %330 = vmatpush1.msra.mxu0 %v37
    %331 = vmatprep.subr.mxu0 0.0
    %332 = vmatpush2.msra.mxu0 0.0
    %333 = vmatprep.subr.mxu0 0.0
    %334 = vmatpush2.msra.mxu0 0.0
    %335 = vmatprep.subr.mxu0 0.0
    %336 = vmatpush2.msra.mxu0 0.0
    %337 = vmatprep.subr.mxu0 0.0
    %338 = vmatpush2.msra.mxu0 0.0
    %339 = vmatprep.subr.mxu0 0.0
    %340 = vmatpush2.msra.mxu0 0.0
    %341 = vmatprep.subr.mxu0 0.0
    %342 = vmatpush2.msra.mxu0 0.0
    %343 = vmatprep.subr.mxu0 0.0
    %344 = vmatpush2.msra.mxu0 0.0
    %345 = vmatprep.subr.mxu0 0.0
    %346 = vmatpush2.msra.mxu0 0.0
    %347 = vmatprep.subr.mxu0 0.0
    %348 = vmatpush2.msra.mxu0 0.0
    %349 = vmatprep.subr.mxu0 0.0
    %350 = vmatpush2.msra.mxu0 0.0
    %351 = vmatprep.subr.mxu0 0.0
    %352 = vmatpush2.msra.mxu0 0.0
    %353 = vmatprep.subr.mxu0 0.0
    %354 = vmatpush2.msra.mxu0 0.0
    %355 = vmatprep.subr.mxu0 0.0
    %356 = vmatpush2.msra.mxu0 0.0
    %357 = vmatprep.subr.mxu0 0.0
    %358 = vmatpush2.msra.mxu0 0.0
    %359 = vmatprep.subr.mxu0 0.0
    %360 = vmatpush2.msra.mxu0 0.0
    %361 = vmatprep.subr.mxu0 0.0
    %362 = vmatpush2.msra.mxu0 0.0
    %363 = vmatprep.mubr.f32.mxu0 0.0
    %364 = vmatmul.mubr.f32.gmra.mxu0 %v297
    %v365 = vpop.f32.mrf.mxu0
    %v366 = vadd.f32 0.0, %v365
    %v367 = vpop.f32.mrf.mxu0
    %368 = vdwg.mxu0
    %v369 = vadd.f32 %v156, %v366
    %v370 = vxor.u32 %v369, 2147483648
    %v371 = vmul.f32 %v370, 1.442695
    %v372 = vpow.pop %v371
    %v373 = vadd.f32 %v372, 1.0
    %v374 = vrcp.pop %v373
    %v375 = vmul.f32 1.0, %v374
    %v376 = vtanh.pop %v369
    %v377 = vmul.f32 %v375, %v287
    %379 = vrot.lane.b32.xlu0 %v376, 64
    %v380 = vpop.permute.xlu0 %379
    %v382 = vmul.f32 %v375, %v380
    %384 = vrot.lane.b32.xlu0 %v382, 32
    %v385 = vpop.permute.xlu0 %384
    %v387 = vadd.f32 %v377, %v385
    %v388 = vtanh.pop %v387
    %390 = vrot.lane.b32.xlu0 %v388, 64
    %v391 = vpop.permute.xlu0 %390
    %v393 = vmul.f32 %v375, %v391
    %395 = vrot.lane.b32.xlu0 %v393, 32
    %v396 = vpop.permute.xlu0 %395
    %v397 = vsel %vm191, %v396, 0
    %399 = vmatprep.subr.mxu0 0.0
    %400 = vmatpush1.msra.mxu0 0.0
    %401 = vmatprep.subr.mxu0 0.0
    %402 = vmatpush1.msra.mxu0 0.0
    %403 = vmatprep.subr.mxu0 0.0
    %404 = vmatpush1.msra.mxu0 0.0
    %405 = vmatprep.subr.mxu0 0.0
    %406 = vmatpush1.msra.mxu0 0.0
    %407 = vmatprep.subr.mxu0 0.0
    %408 = vmatpush1.msra.mxu0 0.0
    %409 = vmatprep.subr.mxu0 0.0
    %410 = vmatpush1.msra.mxu0 0.0
    %411 = vmatprep.subr.mxu0 0.0
    %412 = vmatpush1.msra.mxu0 0.0
    %413 = vmatprep.subr.mxu0 0.0
    %414 = vmatpush1.msra.mxu0 0.0
    %415 = vmatprep.subr.mxu0 0.0
    %416 = vmatpush1.msra.mxu0 0.0
    %417 = vmatprep.subr.mxu0 0.0
    %418 = vmatpush1.msra.mxu0 0.0
    %419 = vmatprep.subr.mxu0 0.0
    %420 = vmatpush1.msra.mxu0 0.0
    %421 = vmatprep.subr.mxu0 0.0
    %422 = vmatpush1.msra.mxu0 0.0
    %423 = vmatprep.subr.mxu0 0.0
    %424 = vmatpush1.msra.mxu0 %v40
    %425 = vmatprep.subr.mxu0 0.0
    %426 = vmatpush1.msra.mxu0 %v39
    %427 = vmatprep.subr.mxu0 0.0
    %428 = vmatpush1.msra.mxu0 %v38
    %429 = vmatprep.subr.mxu0 0.0
    %430 = vmatpush1.msra.mxu0 %v37
    %431 = vmatprep.subr.mxu0 0.0
    %432 = vmatpush2.msra.mxu0 0.0
    %433 = vmatprep.subr.mxu0 0.0
    %434 = vmatpush2.msra.mxu0 0.0
    %435 = vmatprep.subr.mxu0 0.0
    %436 = vmatpush2.msra.mxu0 0.0
    %437 = vmatprep.subr.mxu0 0.0
    %438 = vmatpush2.msra.mxu0 0.0
    %439 = vmatprep.subr.mxu0 0.0
    %440 = vmatpush2.msra.mxu0 0.0
    %441 = vmatprep.subr.mxu0 0.0
    %442 = vmatpush2.msra.mxu0 0.0
    %443 = vmatprep.subr.mxu0 0.0
    %444 = vmatpush2.msra.mxu0 0.0
    %445 = vmatprep.subr.mxu0 0.0
    %446 = vmatpush2.msra.mxu0 0.0
    %447 = vmatprep.subr.mxu0 0.0
    %448 = vmatpush2.msra.mxu0 0.0
    %449 = vmatprep.subr.mxu0 0.0
    %450 = vmatpush2.msra.mxu0 0.0
    %451 = vmatprep.subr.mxu0 0.0
    %452 = vmatpush2.msra.mxu0 0.0
    %453 = vmatprep.subr.mxu0 0.0
    %454 = vmatpush2.msra.mxu0 0.0
    %455 = vmatprep.subr.mxu0 0.0
    %456 = vmatpush2.msra.mxu0 0.0
    %457 = vmatprep.subr.mxu0 0.0
    %458 = vmatpush2.msra.mxu0 0.0
    %459 = vmatprep.subr.mxu0 0.0
    %460 = vmatpush2.msra.mxu0 0.0
    %461 = vmatprep.subr.mxu0 0.0
    %462 = vmatpush2.msra.mxu0 0.0
    %463 = vmatprep.mubr.f32.mxu0 0.0
    %464 = vmatmul.mubr.f32.gmra.mxu0 %v397
    %v465 = vpop.f32.mrf.mxu0
    %v466 = vadd.f32 0.0, %v465
    %v467 = vpop.f32.mrf.mxu0
    %468 = vdwg.mxu0
    %v469 = vadd.f32 %v161, %v466
    %v470 = vxor.u32 %v469, 2147483648
    %v471 = vmul.f32 %v470, 1.442695
    %v472 = vpow.pop %v471
    %v473 = vadd.f32 %v472, 1.0
    %v474 = vrcp.pop %v473
    %v475 = vmul.f32 1.0, %v474
    %v476 = vtanh.pop %v469
    %v477 = vmul.f32 %v475, %v387
    %479 = vrot.lane.b32.xlu0 %v476, 64
    %v480 = vpop.permute.xlu0 %479
    %v482 = vmul.f32 %v475, %v480
    %484 = vrot.lane.b32.xlu0 %v482, 32
    %v485 = vpop.permute.xlu0 %484
    %v487 = vadd.f32 %v477, %v485
    %v488 = vtanh.pop %v487
    %490 = vrot.lane.b32.xlu0 %v488, 64
    %v491 = vpop.permute.xlu0 %490
    %v493 = vmul.f32 %v475, %v491
    %495 = vrot.lane.b32.xlu0 %v493, 32
    %v496 = vpop.permute.xlu0 %495
    %v497 = vsel %vm191, %v496, 0
    %499 = vmatprep.subr.mxu0 0.0
    %500 = vmatpush1.msra.mxu0 0.0
    %501 = vmatprep.subr.mxu0 0.0
    %502 = vmatpush1.msra.mxu0 0.0
    %503 = vmatprep.subr.mxu0 0.0
    %504 = vmatpush1.msra.mxu0 0.0
    %505 = vmatprep.subr.mxu0 0.0
    %506 = vmatpush1.msra.mxu0 0.0
    %507 = vmatprep.subr.mxu0 0.0
    %508 = vmatpush1.msra.mxu0 0.0
    %509 = vmatprep.subr.mxu0 0.0
    %510 = vmatpush1.msra.mxu0 0.0
    %511 = vmatprep.subr.mxu0 0.0
    %512 = vmatpush1.msra.mxu0 0.0
    %513 = vmatprep.subr.mxu0 0.0
    %514 = vmatpush1.msra.mxu0 0.0
    %515 = vmatprep.subr.mxu0 0.0
    %516 = vmatpush1.msra.mxu0 0.0
    %517 = vmatprep.subr.mxu0 0.0
    %518 = vmatpush1.msra.mxu0 0.0
    %519 = vmatprep.subr.mxu0 0.0
    %520 = vmatpush1.msra.mxu0 0.0
    %521 = vmatprep.subr.mxu0 0.0
    %522 = vmatpush1.msra.mxu0 0.0
    %523 = vmatprep.subr.mxu0 0.0
    %524 = vmatpush1.msra.mxu0 %v40
    %525 = vmatprep.subr.mxu0 0.0
    %526 = vmatpush1.msra.mxu0 %v39
    %527 = vmatprep.subr.mxu0 0.0
    %528 = vmatpush1.msra.mxu0 %v38
    %529 = vmatprep.subr.mxu0 0.0
    %530 = vmatpush1.msra.mxu0 %v37
    %531 = vmatprep.subr.mxu0 0.0
    %532 = vmatpush2.msra.mxu0 0.0
    %533 = vmatprep.subr.mxu0 0.0
    %534 = vmatpush2.msra.mxu0 0.0
    %535 = vmatprep.subr.mxu0 0.0
    %536 = vmatpush2.msra.mxu0 0.0
    %537 = vmatprep.subr.mxu0 0.0
    %538 = vmatpush2.msra.mxu0 0.0
    %539 = vmatprep.subr.mxu0 0.0
    %540 = vmatpush2.msra.mxu0 0.0
    %541 = vmatprep.subr.mxu0 0.0
    %542 = vmatpush2.msra.mxu0 0.0
    %543 = vmatprep.subr.mxu0 0.0
    %544 = vmatpush2.msra.mxu0 0.0
    %545 = vmatprep.subr.mxu0 0.0
    %546 = vmatpush2.msra.mxu0 0.0
    %547 = vmatprep.subr.mxu0 0.0
    %548 = vmatpush2.msra.mxu0 0.0
    %549 = vmatprep.subr.mxu0 0.0
    %550 = vmatpush2.msra.mxu0 0.0
    %551 = vmatprep.subr.mxu0 0.0
    %552 = vmatpush2.msra.mxu0 0.0
    %553 = vmatprep.subr.mxu0 0.0
    %554 = vmatpush2.msra.mxu0 0.0
    %555 = vmatprep.subr.mxu0 0.0
    %556 = vmatpush2.msra.mxu0 0.0
    %557 = vmatprep.subr.mxu0 0.0
    %558 = vmatpush2.msra.mxu0 0.0
    %559 = vmatprep.subr.mxu0 0.0
    %560 = vmatpush2.msra.mxu0 0.0
    %561 = vmatprep.subr.mxu0 0.0
    %562 = vmatpush2.msra.mxu0 0.0
    %563 = vmatprep.mubr.f32.mxu0 0.0
    %564 = vmatmul.mubr.f32.gmra.mxu0 %v497
    %v565 = vpop.f32.mrf.mxu0
    %v566 = vadd.f32 0.0, %v565
    %v567 = vpop.f32.mrf.mxu0
    %568 = vdwg.mxu0
    %v569 = vadd.f32 %v166, %v566
    %v570 = vxor.u32 %v569, 2147483648
    %v571 = vmul.f32 %v570, 1.442695
    %v572 = vpow.pop %v571
    %v573 = vadd.f32 %v572, 1.0
    %v574 = vrcp.pop %v573
    %v575 = vmul.f32 1.0, %v574
    %v576 = vtanh.pop %v569
    %v577 = vmul.f32 %v575, %v487
    %579 = vrot.lane.b32.xlu0 %v576, 64
    %v580 = vpop.permute.xlu0 %579
    %v582 = vmul.f32 %v575, %v580
    %584 = vrot.lane.b32.xlu0 %v582, 32
    %v585 = vpop.permute.xlu0 %584
    %v587 = vadd.f32 %v577, %v585
    %v588 = vtanh.pop %v587
    %590 = vrot.lane.b32.xlu0 %v588, 64
    %v591 = vpop.permute.xlu0 %590
    %v593 = vmul.f32 %v575, %v591
    %595 = vrot.lane.b32.xlu0 %v593, 32
    %v596 = vpop.permute.xlu0 %595
    %v597 = vsel %vm191, %v596, 0
    %599 = vmatprep.subr.mxu0 0.0
    %600 = vmatpush1.msra.mxu0 0.0
    %601 = vmatprep.subr.mxu0 0.0
    %602 = vmatpush1.msra.mxu0 0.0
    %603 = vmatprep.subr.mxu0 0.0
    %604 = vmatpush1.msra.mxu0 0.0
    %605 = vmatprep.subr.mxu0 0.0
    %606 = vmatpush1.msra.mxu0 0.0
    %607 = vmatprep.subr.mxu0 0.0
    %608 = vmatpush1.msra.mxu0 0.0
    %609 = vmatprep.subr.mxu0 0.0
    %610 = vmatpush1.msra.mxu0 0.0
    %611 = vmatprep.subr.mxu0 0.0
    %612 = vmatpush1.msra.mxu0 0.0
    %613 = vmatprep.subr.mxu0 0.0
    %614 = vmatpush1.msra.mxu0 0.0
    %615 = vmatprep.subr.mxu0 0.0
    %616 = vmatpush1.msra.mxu0 0.0
    %617 = vmatprep.subr.mxu0 0.0
    %618 = vmatpush1.msra.mxu0 0.0
    %619 = vmatprep.subr.mxu0 0.0
    %620 = vmatpush1.msra.mxu0 0.0
    %621 = vmatprep.subr.mxu0 0.0
    %622 = vmatpush1.msra.mxu0 0.0
    %623 = vmatprep.subr.mxu0 0.0
    %624 = vmatpush1.msra.mxu0 %v40
    %625 = vmatprep.subr.mxu0 0.0
    %626 = vmatpush1.msra.mxu0 %v39
    %627 = vmatprep.subr.mxu0 0.0
    %628 = vmatpush1.msra.mxu0 %v38
    %629 = vmatprep.subr.mxu0 0.0
    %630 = vmatpush1.msra.mxu0 %v37
    %631 = vmatprep.subr.mxu0 0.0
    %632 = vmatpush2.msra.mxu0 0.0
    %633 = vmatprep.subr.mxu0 0.0
    %634 = vmatpush2.msra.mxu0 0.0
    %635 = vmatprep.subr.mxu0 0.0
    %636 = vmatpush2.msra.mxu0 0.0
    %637 = vmatprep.subr.mxu0 0.0
    %638 = vmatpush2.msra.mxu0 0.0
    %639 = vmatprep.subr.mxu0 0.0
    %640 = vmatpush2.msra.mxu0 0.0
    %641 = vmatprep.subr.mxu0 0.0
    %642 = vmatpush2.msra.mxu0 0.0
    %643 = vmatprep.subr.mxu0 0.0
    %644 = vmatpush2.msra.mxu0 0.0
    %645 = vmatprep.subr.mxu0 0.0
    %646 = vmatpush2.msra.mxu0 0.0
    %647 = vmatprep.subr.mxu0 0.0
    %648 = vmatpush2.msra.mxu0 0.0
    %649 = vmatprep.subr.mxu0 0.0
    %650 = vmatpush2.msra.mxu0 0.0
    %651 = vmatprep.subr.mxu0 0.0
    %652 = vmatpush2.msra.mxu0 0.0
    %653 = vmatprep.subr.mxu0 0.0
    %654 = vmatpush2.msra.mxu0 0.0
    %655 = vmatprep.subr.mxu0 0.0
    %656 = vmatpush2.msra.mxu0 0.0
    %657 = vmatprep.subr.mxu0 0.0
    %658 = vmatpush2.msra.mxu0 0.0
    %659 = vmatprep.subr.mxu0 0.0
    %660 = vmatpush2.msra.mxu0 0.0
    %661 = vmatprep.subr.mxu0 0.0
    %662 = vmatpush2.msra.mxu0 0.0
    %663 = vmatprep.mubr.f32.mxu0 0.0
    %664 = vmatmul.mubr.f32.gmra.mxu0 %v597
    %v665 = vpop.f32.mrf.mxu0
    %v666 = vadd.f32 0.0, %v665
    %v667 = vpop.f32.mrf.mxu0
    %668 = vdwg.mxu0
    %v669 = vadd.f32 %v171, %v666
    %v670 = vxor.u32 %v669, 2147483648
    %v671 = vmul.f32 %v670, 1.442695
    %v672 = vpow.pop %v671
    %v673 = vadd.f32 %v672, 1.0
    %v674 = vrcp.pop %v673
    %v675 = vmul.f32 1.0, %v674
    %v676 = vtanh.pop %v669
    %v677 = vmul.f32 %v675, %v587
    %679 = vrot.lane.b32.xlu0 %v676, 64
    %v680 = vpop.permute.xlu0 %679
    %v682 = vmul.f32 %v675, %v680
    %684 = vrot.lane.b32.xlu0 %v682, 32
    %v685 = vpop.permute.xlu0 %684
    %v687 = vadd.f32 %v677, %v685
    %v688 = vtanh.pop %v687
    %690 = vrot.lane.b32.xlu0 %v688, 64
    %v691 = vpop.permute.xlu0 %690
    %v693 = vmul.f32 %v675, %v691
    %695 = vrot.lane.b32.xlu0 %v693, 32
    %v696 = vpop.permute.xlu0 %695
    %v697 = vsel %vm191, %v696, 0
    %699 = vmatprep.subr.mxu0 0.0
    %700 = vmatpush1.msra.mxu0 0.0
    %701 = vmatprep.subr.mxu0 0.0
    %702 = vmatpush1.msra.mxu0 0.0
    %703 = vmatprep.subr.mxu0 0.0
    %704 = vmatpush1.msra.mxu0 0.0
    %705 = vmatprep.subr.mxu0 0.0
    %706 = vmatpush1.msra.mxu0 0.0
    %707 = vmatprep.subr.mxu0 0.0
    %708 = vmatpush1.msra.mxu0 0.0
    %709 = vmatprep.subr.mxu0 0.0
    %710 = vmatpush1.msra.mxu0 0.0
    %711 = vmatprep.subr.mxu0 0.0
    %712 = vmatpush1.msra.mxu0 0.0
    %713 = vmatprep.subr.mxu0 0.0
    %714 = vmatpush1.msra.mxu0 0.0
    %715 = vmatprep.subr.mxu0 0.0
    %716 = vmatpush1.msra.mxu0 0.0
    %717 = vmatprep.subr.mxu0 0.0
    %718 = vmatpush1.msra.mxu0 0.0
    %719 = vmatprep.subr.mxu0 0.0
    %720 = vmatpush1.msra.mxu0 0.0
    %721 = vmatprep.subr.mxu0 0.0
    %722 = vmatpush1.msra.mxu0 0.0
    %723 = vmatprep.subr.mxu0 0.0
    %724 = vmatpush1.msra.mxu0 %v40
    %725 = vmatprep.subr.mxu0 0.0
    %726 = vmatpush1.msra.mxu0 %v39
    %727 = vmatprep.subr.mxu0 0.0
    %728 = vmatpush1.msra.mxu0 %v38
    %729 = vmatprep.subr.mxu0 0.0
    %730 = vmatpush1.msra.mxu0 %v37
    %731 = vmatprep.subr.mxu0 0.0
    %732 = vmatpush2.msra.mxu0 0.0
    %733 = vmatprep.subr.mxu0 0.0
    %734 = vmatpush2.msra.mxu0 0.0
    %735 = vmatprep.subr.mxu0 0.0
    %736 = vmatpush2.msra.mxu0 0.0
    %737 = vmatprep.subr.mxu0 0.0
    %738 = vmatpush2.msra.mxu0 0.0
    %739 = vmatprep.subr.mxu0 0.0
    %740 = vmatpush2.msra.mxu0 0.0
    %741 = vmatprep.subr.mxu0 0.0
    %742 = vmatpush2.msra.mxu0 0.0
    %743 = vmatprep.subr.mxu0 0.0
    %744 = vmatpush2.msra.mxu0 0.0
    %745 = vmatprep.subr.mxu0 0.0
    %746 = vmatpush2.msra.mxu0 0.0
    %747 = vmatprep.subr.mxu0 0.0
    %748 = vmatpush2.msra.mxu0 0.0
    %749 = vmatprep.subr.mxu0 0.0
    %750 = vmatpush2.msra.mxu0 0.0
    %751 = vmatprep.subr.mxu0 0.0
    %752 = vmatpush2.msra.mxu0 0.0
    %753 = vmatprep.subr.mxu0 0.0
    %754 = vmatpush2.msra.mxu0 0.0
    %755 = vmatprep.subr.mxu0 0.0
    %756 = vmatpush2.msra.mxu0 0.0
    %757 = vmatprep.subr.mxu0 0.0
    %758 = vmatpush2.msra.mxu0 0.0
    %759 = vmatprep.subr.mxu0 0.0
    %760 = vmatpush2.msra.mxu0 0.0
    %761 = vmatprep.subr.mxu0 0.0
    %762 = vmatpush2.msra.mxu0 0.0
    %763 = vmatprep.mubr.f32.mxu0 0.0
    %764 = vmatmul.mubr.f32.gmra.mxu0 %v697
    %v765 = vpop.f32.mrf.mxu0
    %v766 = vadd.f32 0.0, %v765
    %v767 = vpop.f32.mrf.mxu0
    %768 = vdwg.mxu0
    %v769 = vadd.f32 %v176, %v766
    %v770 = vxor.u32 %v769, 2147483648
    %v771 = vmul.f32 %v770, 1.442695
    %v772 = vpow.pop %v771
    %v773 = vadd.f32 %v772, 1.0
    %v774 = vrcp.pop %v773
    %v775 = vmul.f32 1.0, %v774
    %v776 = vtanh.pop %v769
    %v777 = vmul.f32 %v775, %v687
    %779 = vrot.lane.b32.xlu0 %v776, 64
    %v780 = vpop.permute.xlu0 %779
    %v782 = vmul.f32 %v775, %v780
    %784 = vrot.lane.b32.xlu0 %v782, 32
    %v785 = vpop.permute.xlu0 %784
    %v787 = vadd.f32 %v777, %v785
    %v788 = vtanh.pop %v787
    %790 = vrot.lane.b32.xlu0 %v788, 64
    %v791 = vpop.permute.xlu0 %790
    %v793 = vmul.f32 %v775, %v791
    %795 = vrot.lane.b32.xlu0 %v793, 32
    %v796 = vpop.permute.xlu0 %795
    %v797 = vsel %vm191, %v796, 0
    %799 = vmatprep.subr.mxu0 0.0
    %800 = vmatpush1.msra.mxu0 0.0
    %801 = vmatprep.subr.mxu0 0.0
    %802 = vmatpush1.msra.mxu0 0.0
    %803 = vmatprep.subr.mxu0 0.0
    %804 = vmatpush1.msra.mxu0 0.0
    %805 = vmatprep.subr.mxu0 0.0
    %806 = vmatpush1.msra.mxu0 0.0
    %807 = vmatprep.subr.mxu0 0.0
    %808 = vmatpush1.msra.mxu0 0.0
    %809 = vmatprep.subr.mxu0 0.0
    %810 = vmatpush1.msra.mxu0 0.0
    %811 = vmatprep.subr.mxu0 0.0
    %812 = vmatpush1.msra.mxu0 0.0
    %813 = vmatprep.subr.mxu0 0.0
    %814 = vmatpush1.msra.mxu0 0.0
    %815 = vmatprep.subr.mxu0 0.0
    %816 = vmatpush1.msra.mxu0 0.0
    %817 = vmatprep.subr.mxu0 0.0
    %818 = vmatpush1.msra.mxu0 0.0
    %819 = vmatprep.subr.mxu0 0.0
    %820 = vmatpush1.msra.mxu0 0.0
    %821 = vmatprep.subr.mxu0 0.0
    %822 = vmatpush1.msra.mxu0 0.0
    %823 = vmatprep.subr.mxu0 0.0
    %824 = vmatpush1.msra.mxu0 %v40
    %825 = vmatprep.subr.mxu0 0.0
    %826 = vmatpush1.msra.mxu0 %v39
    %827 = vmatprep.subr.mxu0 0.0
    %828 = vmatpush1.msra.mxu0 %v38
    %829 = vmatprep.subr.mxu0 0.0
    %830 = vmatpush1.msra.mxu0 %v37
    %831 = vmatprep.subr.mxu0 0.0
    %832 = vmatpush2.msra.mxu0 0.0
    %833 = vmatprep.subr.mxu0 0.0
    %834 = vmatpush2.msra.mxu0 0.0
    %835 = vmatprep.subr.mxu0 0.0
    %836 = vmatpush2.msra.mxu0 0.0
    %837 = vmatprep.subr.mxu0 0.0
    %838 = vmatpush2.msra.mxu0 0.0
    %839 = vmatprep.subr.mxu0 0.0
    %840 = vmatpush2.msra.mxu0 0.0
    %841 = vmatprep.subr.mxu0 0.0
    %842 = vmatpush2.msra.mxu0 0.0
    %843 = vmatprep.subr.mxu0 0.0
    %844 = vmatpush2.msra.mxu0 0.0
    %845 = vmatprep.subr.mxu0 0.0
    %846 = vmatpush2.msra.mxu0 0.0
    %847 = vmatprep.subr.mxu0 0.0
    %848 = vmatpush2.msra.mxu0 0.0
    %849 = vmatprep.subr.mxu0 0.0
    %850 = vmatpush2.msra.mxu0 0.0
    %851 = vmatprep.subr.mxu0 0.0
    %852 = vmatpush2.msra.mxu0 0.0
    %853 = vmatprep.subr.mxu0 0.0
    %854 = vmatpush2.msra.mxu0 0.0
    %855 = vmatprep.subr.mxu0 0.0
    %856 = vmatpush2.msra.mxu0 0.0
    %857 = vmatprep.subr.mxu0 0.0
    %858 = vmatpush2.msra.mxu0 0.0
    %859 = vmatprep.subr.mxu0 0.0
    %860 = vmatpush2.msra.mxu0 0.0
    %861 = vmatprep.subr.mxu0 0.0
    %862 = vmatpush2.msra.mxu0 0.0
    %863 = vmatprep.mubr.f32.mxu0 0.0
    %864 = vmatmul.mubr.f32.gmra.mxu0 %v797
    %v865 = vpop.f32.mrf.mxu0
    %v866 = vadd.f32 0.0, %v865
    %v867 = vpop.f32.mrf.mxu0
    %868 = vdwg.mxu0
    %v869 = vadd.f32 %v181, %v866
    %v870 = vxor.u32 %v869, 2147483648
    %v871 = vmul.f32 %v870, 1.442695
    %v872 = vpow.pop %v871
    %v873 = vadd.f32 %v872, 1.0
    %v874 = vrcp.pop %v873
    %v875 = vmul.f32 1.0, %v874
    %v876 = vtanh.pop %v869
    %v877 = vmul.f32 %v875, %v787
    %879 = vrot.lane.b32.xlu0 %v876, 64
    %v880 = vpop.permute.xlu0 %879
    %v882 = vmul.f32 %v875, %v880
    %884 = vrot.lane.b32.xlu0 %v882, 32
    %v885 = vpop.permute.xlu0 %884
    %v887 = vadd.f32 %v877, %v885
    %v888 = vtanh.pop %v887
    %890 = vrot.lane.b32.xlu0 %v888, 64
    %v891 = vpop.permute.xlu0 %890
    %v893 = vmul.f32 %v875, %v891
    %895 = vrot.lane.b32.xlu0 %v893, 32
    %v896 = vpop.permute.xlu0 %895
    %v897 = vsel %vm191, %v896, 0
    %899 = vmatprep.subr.mxu0 0.0
    %900 = vmatpush1.msra.mxu0 0.0
    %901 = vmatprep.subr.mxu0 0.0
    %902 = vmatpush1.msra.mxu0 0.0
    %903 = vmatprep.subr.mxu0 0.0
    %904 = vmatpush1.msra.mxu0 0.0
    %905 = vmatprep.subr.mxu0 0.0
    %906 = vmatpush1.msra.mxu0 0.0
    %907 = vmatprep.subr.mxu0 0.0
    %908 = vmatpush1.msra.mxu0 0.0
    %909 = vmatprep.subr.mxu0 0.0
    %910 = vmatpush1.msra.mxu0 0.0
    %911 = vmatprep.subr.mxu0 0.0
    %912 = vmatpush1.msra.mxu0 0.0
    %913 = vmatprep.subr.mxu0 0.0
    %914 = vmatpush1.msra.mxu0 0.0
    %915 = vmatprep.subr.mxu0 0.0
    %916 = vmatpush1.msra.mxu0 0.0
    %917 = vmatprep.subr.mxu0 0.0
    %918 = vmatpush1.msra.mxu0 0.0
    %919 = vmatprep.subr.mxu0 0.0
    %920 = vmatpush1.msra.mxu0 0.0
    %921 = vmatprep.subr.mxu0 0.0
    %922 = vmatpush1.msra.mxu0 0.0
    %923 = vmatprep.subr.mxu0 0.0
    %924 = vmatpush1.msra.mxu0 %v40
    %925 = vmatprep.subr.mxu0 0.0
    %926 = vmatpush1.msra.mxu0 %v39
    %927 = vmatprep.subr.mxu0 0.0
    %928 = vmatpush1.msra.mxu0 %v38
    %929 = vmatprep.subr.mxu0 0.0
    %930 = vmatpush1.msra.mxu0 %v37
    %931 = vmatprep.subr.mxu0 0.0
    %932 = vmatpush2.msra.mxu0 0.0
    %933 = vmatprep.subr.mxu0 0.0
    %934 = vmatpush2.msra.mxu0 0.0
    %935 = vmatprep.subr.mxu0 0.0
    %936 = vmatpush2.msra.mxu0 0.0
    %937 = vmatprep.subr.mxu0 0.0
    %938 = vmatpush2.msra.mxu0 0.0
    %939 = vmatprep.subr.mxu0 0.0
    %940 = vmatpush2.msra.mxu0 0.0
    %941 = vmatprep.subr.mxu0 0.0
    %942 = vmatpush2.msra.mxu0 0.0
    %943 = vmatprep.subr.mxu0 0.0
    %944 = vmatpush2.msra.mxu0 0.0
    %945 = vmatprep.subr.mxu0 0.0
    %946 = vmatpush2.msra.mxu0 0.0
    %947 = vmatprep.subr.mxu0 0.0
    %948 = vmatpush2.msra.mxu0 0.0
    %949 = vmatprep.subr.mxu0 0.0
    %950 = vmatpush2.msra.mxu0 0.0
    %951 = vmatprep.subr.mxu0 0.0
    %952 = vmatpush2.msra.mxu0 0.0
    %953 = vmatprep.subr.mxu0 0.0
    %954 = vmatpush2.msra.mxu0 0.0
    %955 = vmatprep.subr.mxu0 0.0
    %956 = vmatpush2.msra.mxu0 0.0
    %957 = vmatprep.subr.mxu0 0.0
    %958 = vmatpush2.msra.mxu0 0.0
    %959 = vmatprep.subr.mxu0 0.0
    %960 = vmatpush2.msra.mxu0 0.0
    %961 = vmatprep.subr.mxu0 0.0
    %962 = vmatpush2.msra.mxu0 0.0
    %963 = vmatprep.mubr.f32.mxu0 0.0
    %964 = vmatmul.mubr.f32.gmra.mxu0 %v897
    %v965 = vpop.f32.mrf.mxu0
    %v966 = vadd.f32 0.0, %v965
    %v967 = vpop.f32.mrf.mxu0
    %968 = vdwg.mxu0
    %v969 = vadd.f32 %v186, %v966
    %v970 = vxor.u32 %v969, 2147483648
    %v971 = vmul.f32 %v970, 1.442695
    %v972 = vpow.pop %v971
    %v973 = vadd.f32 %v972, 1.0
    %v974 = vrcp.pop %v973
    %v975 = vmul.f32 1.0, %v974
    %v976 = vtanh.pop %v969
    %v977 = vmul.f32 %v975, %v887
    %979 = vrot.lane.b32.xlu0 %v976, 64
    %v980 = vpop.permute.xlu0 %979
    %v982 = vmul.f32 %v975, %v980
    %984 = vrot.lane.b32.xlu0 %v982, 32
    %v985 = vpop.permute.xlu0 %984
    %v987 = vadd.f32 %v977, %v985
    %v988 = vtanh.pop %v987
    %990 = vrot.lane.b32.xlu0 %v988, 64
    %v991 = vpop.permute.xlu0 %990
    %v993 = vmul.f32 %v975, %v991
    %995 = vrot.lane.b32.xlu0 %v993, 32
    %v996 = vpop.permute.xlu0 %995
    %998 = vst.msk [vmem:[#allocation6] sm:$0xff] %vm191, %v996
    %1000 = vrot.lane.b32.xlu0 %v987, 96
    %v1001 = vpop.permute.xlu0 %1000
    %1003 = vst.msk [vmem:[#allocation8] sm:$0xff] %vm191, %v1001
    %v1004 = vlaneseq
    %v1005 = vshrl.u32 %v1004, 7
    %v1006 = vsub.s32 0, %v1005
    %v1007 = vrot.slane %v46, %v1006
    %v1008 = vsel %vm191, %v996, 0
    %1010 = vmatprep.subr.mxu0 0.0
    %1011 = vmatpush1.msra.mxu0 0.0
    %1012 = vmatprep.subr.mxu0 0.0
    %1013 = vmatpush1.msra.mxu0 0.0
    %1014 = vmatprep.subr.mxu0 0.0
    %1015 = vmatpush1.msra.mxu0 0.0
    %1016 = vmatprep.subr.mxu0 0.0
    %1017 = vmatpush1.msra.mxu0 0.0
    %1018 = vmatprep.subr.mxu0 0.0
    %1019 = vmatpush1.msra.mxu0 0.0
    %1020 = vmatprep.subr.mxu0 0.0
    %1021 = vmatpush1.msra.mxu0 0.0
    %1022 = vmatprep.subr.mxu0 0.0
    %1023 = vmatpush1.msra.mxu0 0.0
    %1024 = vmatprep.subr.mxu0 0.0
    %1025 = vmatpush1.msra.mxu0 0.0
    %1026 = vmatprep.subr.mxu0 0.0
    %1027 = vmatpush1.msra.mxu0 0.0
    %1028 = vmatprep.subr.mxu0 0.0
    %1029 = vmatpush1.msra.mxu0 0.0
    %1030 = vmatprep.subr.mxu0 0.0
    %1031 = vmatpush1.msra.mxu0 0.0
    %1032 = vmatprep.subr.mxu0 0.0
    %1033 = vmatpush1.msra.mxu0 0.0
    %1034 = vmatprep.subr.mxu0 0.0
    %1035 = vmatpush1.msra.mxu0 %v45
    %1036 = vmatprep.subr.mxu0 0.0
    %1037 = vmatpush1.msra.mxu0 %v44
    %1038 = vmatprep.subr.mxu0 0.0
    %1039 = vmatpush1.msra.mxu0 %v43
    %1040 = vmatprep.subr.mxu0 0.0
    %1041 = vmatpush1.msra.mxu0 %v42
    %1042 = vmatprep.subr.mxu0 0.0
    %1043 = vmatpush2.msra.mxu0 0.0
    %1044 = vmatprep.subr.mxu0 0.0
    %1045 = vmatpush2.msra.mxu0 0.0
    %1046 = vmatprep.subr.mxu0 0.0
    %1047 = vmatpush2.msra.mxu0 0.0
    %1048 = vmatprep.subr.mxu0 0.0
    %1049 = vmatpush2.msra.mxu0 0.0
    %1050 = vmatprep.subr.mxu0 0.0
    %1051 = vmatpush2.msra.mxu0 0.0
    %1052 = vmatprep.subr.mxu0 0.0
    %1053 = vmatpush2.msra.mxu0 0.0
    %1054 = vmatprep.subr.mxu0 0.0
    %1055 = vmatpush2.msra.mxu0 0.0
    %1056 = vmatprep.subr.mxu0 0.0
    %1057 = vmatpush2.msra.mxu0 0.0
    %1058 = vmatprep.subr.mxu0 0.0
    %1059 = vmatpush2.msra.mxu0 0.0
    %1060 = vmatprep.subr.mxu0 0.0
    %1061 = vmatpush2.msra.mxu0 0.0
    %1062 = vmatprep.subr.mxu0 0.0
    %1063 = vmatpush2.msra.mxu0 0.0
    %1064 = vmatprep.subr.mxu0 0.0
    %1065 = vmatpush2.msra.mxu0 0.0
    %1066 = vmatprep.subr.mxu0 0.0
    %1067 = vmatpush2.msra.mxu0 0.0
    %1068 = vmatprep.subr.mxu0 0.0
    %1069 = vmatpush2.msra.mxu0 0.0
    %1070 = vmatprep.subr.mxu0 0.0
    %1071 = vmatpush2.msra.mxu0 0.0
    %1072 = vmatprep.subr.mxu0 0.0
    %1073 = vmatpush2.msra.mxu0 0.0
    %1074 = vmatprep.mubr.f32.mxu0 0.0
    %1075 = vmatmul.mubr.f32.gmra.mxu0 %v297
    %v1076 = vpop.f32.mrf.mxu0
    %v1077 = vadd.f32 %v1007, %v1076
    %v1078 = vpop.f32.mrf.mxu0
    %1079 = vmatprep.mubr.f32.mxu0 0.0
    %1080 = vmatmul.mubr.f32.gmra.mxu0 %v397
    %v1081 = vpop.f32.mrf.mxu0
    %v1082 = vadd.f32 %v1007, %v1081
    %v1083 = vpop.f32.mrf.mxu0
    %1084 = vmatprep.mubr.f32.mxu0 0.0
    %1085 = vmatmul.mubr.f32.gmra.mxu0 %v497
    %v1086 = vpop.f32.mrf.mxu0
    %v1087 = vadd.f32 %v1007, %v1086
    %v1088 = vpop.f32.mrf.mxu0
    %1089 = vmatprep.mubr.f32.mxu0 0.0
    %1090 = vmatmul.mubr.f32.gmra.mxu0 %v597
    %v1091 = vpop.f32.mrf.mxu0
    %v1092 = vadd.f32 %v1007, %v1091
    %v1093 = vpop.f32.mrf.mxu0
    %1094 = vmatprep.mubr.f32.mxu0 0.0
    %1095 = vmatmul.mubr.f32.gmra.mxu0 %v697
    %v1096 = vpop.f32.mrf.mxu0
    %v1097 = vadd.f32 %v1007, %v1096
    %v1098 = vpop.f32.mrf.mxu0
    %1099 = vmatprep.mubr.f32.mxu0 0.0
    %1100 = vmatmul.mubr.f32.gmra.mxu0 %v797
    %v1101 = vpop.f32.mrf.mxu0
    %v1102 = vadd.f32 %v1007, %v1101
    %v1103 = vpop.f32.mrf.mxu0
    %1104 = vmatprep.mubr.f32.mxu0 0.0
    %1105 = vmatmul.mubr.f32.gmra.mxu0 %v897
    %v1106 = vpop.f32.mrf.mxu0
    %v1107 = vadd.f32 %v1007, %v1106
    %v1108 = vpop.f32.mrf.mxu0
    %1109 = vmatprep.mubr.f32.mxu0 0.0
    %1110 = vmatmul.mubr.f32.gmra.mxu0 %v1008
    %v1111 = vpop.f32.mrf.mxu0
    %v1112 = vadd.f32 %v1007, %v1111
    %v1113 = vpop.f32.mrf.mxu0
    %1114 = vdwg.mxu0
    %1115 = vst [vmem:[#allocation5] sm:$0xff] %v1077
    %1116 = vst [vmem:[#allocation5 + $0x8] sm:$0xff] %v1082
    %1117 = vst [vmem:[#allocation5 + $0x10] sm:$0xff] %v1087
    %1118 = vst [vmem:[#allocation5 + $0x18] sm:$0xff] %v1092
    %1119 = vst [vmem:[#allocation5 + $0x20] sm:$0xff] %v1097
    %1120 = vst [vmem:[#allocation5 + $0x28] sm:$0xff] %v1102
    %1121 = vst [vmem:[#allocation5 + $0x30] sm:$0xff] %v1107
    %1122 = vst [vmem:[#allocation5 + $0x38] sm:$0xff] %v1112
    // Predicated region
    $region22: #{tpu_custom_call.1} parent=1 // pred_check
      _
    $region23: #{tpu_custom_call.1} parent=1 // pred_check_branch
      %1124 = sbr.rel (0) target = $region25
    $region24: #{tpu_custom_call.1} parent=1 // pred_region
      %s1126 = ssub.s32 1024, 1024
      %1127 = vsyncadd [#allocation4], %s1126
      %s1128 = sshll.u32 [#allocation5], 4
      %s1129 = int_to_ptr.vmem [resolvable:$true] %s1128
      %1134 = dma.vmem_to_hbm [thread:$0]  %s1129, 1024, %s4, [#allocation4], 128, 128, 8
    $region25: #{tpu_custom_call.1} parent=1 // pred_fallthru
      _
    // Predicated region
    $region26: #{tpu_custom_call.1} parent=1 // pred_check
      _
    $region27: #{tpu_custom_call.1} parent=1 // pred_check_branch
      %1136 = sbr.rel (0) target = $region29
    $region28: #{tpu_custom_call.1} parent=1 // pred_region
      %s1138 = ssub.s32 128, 128
      %1139 = vsyncadd [#allocation7], %s1138
      %s1141 = sshll.u32 [#allocation6], 4
      %s1142 = int_to_ptr.vmem [resolvable:$true] %s1141
      %1144 = dma.vmem_to_hbm [thread:$0]  %s1142, 128, %s5, [#allocation7]
    $region29: #{tpu_custom_call.1} parent=1 // pred_fallthru
      _
    // Predicated region
    $region30: #{tpu_custom_call.1} parent=1 // pred_check
      _
    $region31: #{tpu_custom_call.1} parent=1 // pred_check_branch
      %1146 = sbr.rel (0) target = $region33
    $region32: #{tpu_custom_call.1} parent=1 // pred_region
      %s1148 = ssub.s32 128, 128
      %1149 = vsyncadd [#allocation7], %s1148
      %s1151 = sshll.u32 [#allocation8], 4
      %s1152 = int_to_ptr.vmem [resolvable:$true] %s1151
      %1154 = dma.vmem_to_hbm [thread:$0]  %s1152, 128, %s6, [#allocation7]
    $region33: #{tpu_custom_call.1} parent=1 // pred_fallthru
      _
    // Predicated region
    $region34: #{tpu_custom_call.1} parent=1 // pred_check
      _
    $region35: #{tpu_custom_call.1} parent=1 // pred_check_branch
      %1156 = sbr.rel (0) target = $region37
    $region36: #{tpu_custom_call.1} parent=1 // pred_region
      %1157 = dma.done [#allocation4], 1024
    $region37: #{tpu_custom_call.1} parent=1 // pred_fallthru
      _
    // Predicated region
    $region38: #{tpu_custom_call.1} parent=1 // pred_check
      _
    $region39: #{tpu_custom_call.1} parent=1 // pred_check_branch
      %1159 = sbr.rel (0) target = $region41
    $region40: #{tpu_custom_call.1} parent=1 // pred_region
      %1160 = dma.done [#allocation7], 128
    $region41: #{tpu_custom_call.1} parent=1 // pred_fallthru
      _
    // Predicated region
    $region42: #{tpu_custom_call.1} parent=1 // pred_check
      _
    $region43: #{tpu_custom_call.1} parent=1 // pred_check_branch
      %1162 = sbr.rel (0) target = $region45
    $region44: #{tpu_custom_call.1} parent=1 // pred_region
      %1163 = dma.done [#allocation7], 128
    $region45: #{tpu_custom_call.1} parent=1 // pred_fallthru
      _
    %1164 = vsyncpa [#allocation3], 1
    %1165 = vsyncpa [#allocation4], 1
    %1166 = vsyncpa [#allocation7], 1

</llo_original>
